<compile_context>
chip_gen: v6e
topology: v6e:2x2x1
jax: 0.10.0
libtpu: 0.0.40
codegen_flags: <defaults>
</compile_context>

<pallas_src>
import math
import jax
import jax.numpy as jnp
from jax import lax
from jax.experimental import pallas as pl
from jax.experimental.pallas import tpu as pltpu


def temporal_decay_kernel(x_ref, w_ref, b_ref, o_ref):
    # z = x @ W.T + b, contracting the feature dim of both operands on the MXU
    # (no explicit .T -> no XLU transpose of the weight tile).
    z = lax.dot_general(
        x_ref[...], w_ref[...],
        dimension_numbers=(((1,), (1,)), ((), ())),
        preferred_element_type=jnp.float32,
    )
    z = z + b_ref[...]                          # (1, D_out) bias broadcast over batch tile
    gamma = jnp.exp(-jnp.maximum(z, 0.0))       # exp(-relu(z)); exp runs on the EUP
    o_ref[...] = gamma.astype(o_ref.dtype)


def temporal_decay(x, W, b, *, diag=False, block_b=None):
    """TemporalDecay forward.

    x: (B, D_in) deltas, W: (D_out, D_in), b: (D_out,).
    diag=True requires D_in == D_out and masks W with the identity (done once here,
    outside the kernel, so no mask tensor ever hits HBM/VMEM in the hot path).
    """
    B, D_in = x.shape
    D_out, D_in_w = W.shape
    assert D_in_w == D_in

    if diag:
        assert D_in == D_out, "diag=True requires input_size == output_size"
        W = W * jnp.eye(D_in, dtype=W.dtype)    # one-time pre-mask (matches W * eye)

    # Batch tiling: keep W resident, stream x/out tiles. Fall back to a single full
    # block when B is small or not tileable by a sublane-aligned block.
    if block_b is None:
        block_b = B if B <= 256 else 256
    if block_b >= B or (B % block_b != 0) or (block_b % 8 != 0):
        block_b = B
    grid = (B // block_b,)

    b2d = b.reshape(1, D_out)                   # lane-dense 2D bias for clean broadcast

    cost = pl.CostEstimate(
        flops=2 * B * D_in * D_out,
        transcendentals=B * D_out,
        bytes_accessed=4 * (B * D_in + D_out * D_in + D_out + B * D_out),
    )

    return pl.pallas_call(
        temporal_decay_kernel,
        out_shape=jax.ShapeDtypeStruct((B, D_out), x.dtype),
        grid_spec=pltpu.PrefetchScalarGridSpec(
            num_scalar_prefetch=0,
            grid=grid,
            in_specs=[
                pl.BlockSpec((block_b, D_in), lambda i: (i, 0)),   # x tile (streamed)
                pl.BlockSpec((D_out, D_in), lambda i: (0, 0)),     # W (resident)
                pl.BlockSpec((1, D_out), lambda i: (0, 0)),        # bias (resident)
            ],
            out_specs=pl.BlockSpec((block_b, D_out), lambda i: (i, 0)),
        ),
        compiler_params=pltpu.CompilerParams(
            # Batch tiles are independent -> megacore can split them (v7x: 2 TCs).
            dimension_semantics=("parallel",),
        ),
        cost_estimate=cost,
    )(x, W, b2d)
    # NOTE: when generalizing to large D on v7x (64 MiB VMEM), pin the resident W
    # spec to a single buffer (pipeline_mode=pl.Buffered(1)) and set vmem_limit_bytes.


def temporal_decay_ref(x, W, b, *, diag=False):
    # Pure-JAX reference matching torch:
    #   gamma = exp(-relu(F.linear(deltas, W * eye if diag else W, b)))
    Weff = W * jnp.eye(W.shape[0], dtype=W.dtype) if diag else W
    z = x @ Weff.T + b
    return jnp.exp(-jnp.maximum(z, 0.0))


if __name__ == "__main__":
    key = jax.random.PRNGKey(0)
    B, D_in = 8, 32
    kx, kw1, kb1, kw2, kb2 = jax.random.split(key, 5)

    # deltas are non-negative time gaps in the original model
    x = jax.random.uniform(kx, (B, D_in), minval=0.0, maxval=5.0, dtype=jnp.float32)

    # Case 1: diag=True (input_size == output_size), eye mask applied to W
    stdv1 = 1.0 / math.sqrt(D_in)
    W1 = jax.random.uniform(kw1, (D_in, D_in), minval=-stdv1, maxval=stdv1, dtype=jnp.float32)
    b1 = jax.random.uniform(kb1, (D_in,), minval=-stdv1, maxval=stdv1, dtype=jnp.float32)
    out1 = jax.block_until_ready(temporal_decay(x, W1, b1, diag=True))
    ref1 = temporal_decay_ref(x, W1, b1, diag=True)
    assert out1.shape == (B, D_in)
    assert jnp.allclose(out1, ref1, atol=1e-5, rtol=1e-5)

    # Case 2: diag=False with a different output size
    D_out = 64
    stdv2 = 1.0 / math.sqrt(D_out)
    W2 = jax.random.uniform(kw2, (D_out, D_in), minval=-stdv2, maxval=stdv2, dtype=jnp.float32)
    b2 = jax.random.uniform(kb2, (D_out,), minval=-stdv2, maxval=stdv2, dtype=jnp.float32)
    out2 = jax.block_until_ready(temporal_decay(x, W2, b2, diag=False))
    ref2 = temporal_decay_ref(x, W2, b2, diag=False)
    assert out2.shape == (B, D_out)
    assert jnp.allclose(out2, ref2, atol=1e-5, rtol=1e-5)

    print("KERNEL_OK")
</pallas_src>

<mosaic_0001>
module attributes {stable_mosaic.version = 11 : i64} {
  func.func @temporal_decay_kernel(%arg0: i32, %arg1: memref<8x32xf32, #tpu.memory_space<vmem>>, %arg2: memref<32x32xf32, #tpu.memory_space<vmem>>, %arg3: memref<1x32xf32, #tpu.memory_space<vmem>>, %arg4: memref<8x32xf32, #tpu.memory_space<vmem>>) attributes {dimension_semantics = [#tpu.dimension_semantics<parallel>], iteration_bounds = array<i64: 1>, scalar_prefetch = 0 : i64, scratch_operands = 0 : i64, tpu.core_type = #tpu.core_type<tc>, window_params = [{transform_indices = @transform_0, window_bounds = array<i64: 8, 32>}, {pipeline_mode = #tpu.pipeline_mode<synchronous>, transform_indices = @transform_1, window_bounds = array<i64: 32, 32>}, {pipeline_mode = #tpu.pipeline_mode<synchronous>, transform_indices = @transform_2, window_bounds = array<i64: 1, 32>}, {transform_indices = @transform_3, window_bounds = array<i64: 8, 32>}]} {
    %c0 = arith.constant 0 : index
    %c0_0 = arith.constant 0 : index
    %0 = vector.load %arg1[%c0, %c0_0] : memref<8x32xf32, #tpu.memory_space<vmem>>, vector<8x32xf32>
    %c0_1 = arith.constant 0 : index
    %c0_2 = arith.constant 0 : index
    %1 = vector.load %arg2[%c0_1, %c0_2] : memref<32x32xf32, #tpu.memory_space<vmem>>, vector<32x32xf32>
    %cst = arith.constant dense<0.000000e+00> : vector<8x32xf32>
    %2 = tpu.matmul %0, %1, %cst {dimension_numbers = #tpu.dot_dimension_numbers<[1], [1], [0], [0], [0, 0, 1, 0], [], []>} : vector<8x32xf32>, vector<32x32xf32>, vector<8x32xf32> -> vector<8x32xf32>
    %c0_3 = arith.constant 0 : index
    %c0_4 = arith.constant 0 : index
    %3 = vector.load %arg3[%c0_3, %c0_4] : memref<1x32xf32, #tpu.memory_space<vmem>>, vector<1x32xf32>
    %4 = vector.broadcast %3 : vector<1x32xf32> to vector<8x32xf32>
    %5 = arith.addf %2, %4 : vector<8x32xf32>
    %cst_5 = arith.constant 0.000000e+00 : f32
    %6 = vector.broadcast %cst_5 : f32 to vector<8x32xf32>
    %7 = arith.maximumf %5, %6 : vector<8x32xf32>
    %cst_6 = arith.constant 0.000000e+00 : f32
    %8 = vector.broadcast %cst_6 : f32 to vector<8x32xf32>
    %9 = arith.subf %8, %7 : vector<8x32xf32>
    %10 = math.exp %9 : vector<8x32xf32>
    %c0_7 = arith.constant 0 : index
    %c0_8 = arith.constant 0 : index
    %11 = vector.load %arg4[%c0_7, %c0_8] : memref<8x32xf32, #tpu.memory_space<vmem>>, vector<8x32xf32>
    tpu.vector_store %arg4[%c0_7, %c0_8], %10 {strides = array<i32>} : memref<8x32xf32, #tpu.memory_space<vmem>>, vector<8x32xf32>,
    return
  }
  func.func @transform_0(%arg0: i32) -> (i32, i32) {
    %c0_i32 = arith.constant 0 : i32
    %c0_i32_0 = arith.constant 0 : i32
    return %arg0, %c0_i32 : i32, i32
  }
  func.func @transform_1(%arg0: i32) -> (i32, i32) {
    %c0_i32 = arith.constant 0 : i32
    %c0_i32_0 = arith.constant 0 : i32
    %c0_i32_1 = arith.constant 0 : i32
    return %c0_i32, %c0_i32_0 : i32, i32
  }
  func.func @transform_2(%arg0: i32) -> (i32, i32) {
    %c0_i32 = arith.constant 0 : i32
    %c0_i32_0 = arith.constant 0 : i32
    %c0_i32_1 = arith.constant 0 : i32
    return %c0_i32, %c0_i32_0 : i32, i32
  }
  func.func @transform_3(%arg0: i32) -> (i32, i32) {
    %c0_i32 = arith.constant 0 : i32
    %c0_i32_0 = arith.constant 0 : i32
    return %arg0, %c0_i32 : i32, i32
  }
}

</mosaic_0001>

<llo_original>
// kernel: tpu_custom_call.1
$region0: #{tpu_custom_call.1}
  #allocation0 [shape = 'u32[]', space=smem, size = 0x4, offset = 0x4, fixed_abs, tag = 'smem constant byte address 0x4 - core index']
  #allocation1 [shape = 'u32[144,128]{1,0:T(1,128)}', space=vmem, size = 0x12000, scoped, tag = 'internal scratch']
  %s0 = inlined_call_operand.hbm [shape: f32[8,32], index: 0, kind: input, shape index: {}]
  %s1 = inlined_call_operand.hbm [shape: f32[32,32], index: 1, kind: input, shape index: {}]
  %s2 = inlined_call_operand.vmem [shape: f32[1,32], index: 2, kind: input, shape index: {}]
  %s3 = inlined_call_operand.hbm [shape: f32[8,32], index: 3, kind: output, shape index: {}]
  %s4 = sld [smem:[#allocation0]]
  $region30: #{tpu_custom_call.1} parent=0
    _
  %s6 = ssub.s32 1, %s4
  %s7 = scalar_select 0, %s6, %s4
  $region1: #{tpu_custom_call.1} parent=0
    #allocation2 [shape = 'u8[4096]{0}', space=vmem, size = 0x1000, scoped, tag = 'input window, operand 0, single buffered']
    #allocation3 [shape = 's32[1]{0}', space=sflag, size = 0x4, scoped, tag = 'scoped memory for tpu_custom_call.1']
    #allocation4 [shape = 's32[1]{0}', space=sflag, size = 0x4, scoped, tag = 'scoped memory for tpu_custom_call.1']
    #allocation5 [shape = 'u8[16384]{0}', space=vmem, size = 0x4000, scoped, tag = 'input window, operand 1, single buffered']
    #allocation6 [shape = 's32[1]{0}', space=sflag, size = 0x4, scoped, tag = 'scoped memory for tpu_custom_call.1']
    #allocation7 [shape = 'u8[4096]{0}', space=vmem, size = 0x1000, scoped, tag = 'output window, operand 0, single buffered']
    %8 = vsyncpa [#allocation3], 0
    %9 = vsyncpa [#allocation6], 0
    %10 = vsyncpa [#allocation4], 0
    // Predicated region
    $region2: #{tpu_custom_call.1} parent=1 // pred_check
      _
    $region3: #{tpu_custom_call.1} parent=1 // pred_check_branch
      %12 = sbr.rel (0) target = $region5
    $region4: #{tpu_custom_call.1} parent=1 // pred_region
      %s14 = ssub.s32 128, 128
      %15 = vsyncadd [#allocation3], %s14
      %s17 = sshll.u32 [#allocation2], 4
      %s18 = int_to_ptr.vmem [resolvable:$true] %s17
      %20 = dma.hbm_to_vmem [thread:$0]  %s0, 128, %s18, [#allocation3]
    $region5: #{tpu_custom_call.1} parent=1 // pred_fallthru
      _
    // Predicated region
    $region6: #{tpu_custom_call.1} parent=1 // pred_check
      _
    $region7: #{tpu_custom_call.1} parent=1 // pred_check_branch
      %22 = sbr.rel (0) target = $region9
    $region8: #{tpu_custom_call.1} parent=1 // pred_region
      %s24 = ssub.s32 512, 512
      %25 = vsyncadd [#allocation6], %s24
      %s26 = sshll.u32 [#allocation5], 4
      %s27 = int_to_ptr.vmem [resolvable:$true] %s26
      %32 = dma.hbm_to_vmem [thread:$0]  %s1, 512, %s27, [#allocation6], 128, 128, 8
    $region9: #{tpu_custom_call.1} parent=1 // pred_fallthru
      _
    // Predicated region
    $region10: #{tpu_custom_call.1} parent=1 // pred_check
      _
    $region11: #{tpu_custom_call.1} parent=1 // pred_check_branch
      %34 = sbr.rel (0) target = $region13
    $region12: #{tpu_custom_call.1} parent=1 // pred_region
      _
    $region13: #{tpu_custom_call.1} parent=1 // pred_fallthru
      _
    // Predicated region
    $region14: #{tpu_custom_call.1} parent=1 // pred_check
      _
    $region15: #{tpu_custom_call.1} parent=1 // pred_check_branch
      %36 = sbr.rel (0) target = $region17
    $region16: #{tpu_custom_call.1} parent=1 // pred_region
      %37 = dma.done [#allocation3], 128
    $region17: #{tpu_custom_call.1} parent=1 // pred_fallthru
      _
    // Predicated region
    $region18: #{tpu_custom_call.1} parent=1 // pred_check
      _
    $region19: #{tpu_custom_call.1} parent=1 // pred_check_branch
      %39 = sbr.rel (0) target = $region21
    $region20: #{tpu_custom_call.1} parent=1 // pred_region
      %40 = dma.done [#allocation6], 512
    $region21: #{tpu_custom_call.1} parent=1 // pred_fallthru
      _
    %v41 = vld [vmem:[#allocation2] sm:$0xff]
    %v42 = vld [vmem:[#allocation5] sm:$0xff]
    %v43 = vld [vmem:[#allocation5 + $0x8] sm:$0xff]
    %v44 = vld [vmem:[#allocation5 + $0x10] sm:$0xff]
    %v45 = vld [vmem:[#allocation5 + $0x18] sm:$0xff]
    %v46 = vld [vmem:[%s2] sm:$0x1]
    %v48 = vlaneseq
    %v49 = vshrl.u32 %v48, 7
    %v50 = vsub.s32 0, %v49
    %v51 = vrot.slane %v46, %v50
    %vm53 = vcmask 261120
    %v55 = vsel %vm53, %v41, 0
    %v58 = vsel %vm53, %v42, 0
    %v61 = vsel %vm53, %v43, 0
    %v64 = vsel %vm53, %v44, 0
    %v67 = vsel %vm53, %v45, 0
    %69 = vmatprep.subr.mxu0 0.0
    %70 = vmatpush1.xpose.msra.mxu0 0.0
    %71 = vmatprep.subr.mxu0 0.0
    %72 = vmatpush1.xpose.msra.mxu0 0.0
    %73 = vmatprep.subr.mxu0 0.0
    %74 = vmatpush1.xpose.msra.mxu0 0.0
    %75 = vmatprep.subr.mxu0 0.0
    %76 = vmatpush1.xpose.msra.mxu0 0.0
    %77 = vmatprep.subr.mxu0 0.0
    %78 = vmatpush1.xpose.msra.mxu0 0.0
    %79 = vmatprep.subr.mxu0 0.0
    %80 = vmatpush1.xpose.msra.mxu0 0.0
    %81 = vmatprep.subr.mxu0 0.0
    %82 = vmatpush1.xpose.msra.mxu0 0.0
    %83 = vmatprep.subr.mxu0 0.0
    %84 = vmatpush1.xpose.msra.mxu0 0.0
    %85 = vmatprep.subr.mxu0 0.0
    %86 = vmatpush1.xpose.msra.mxu0 0.0
    %87 = vmatprep.subr.mxu0 0.0
    %88 = vmatpush1.xpose.msra.mxu0 0.0
    %89 = vmatprep.subr.mxu0 0.0
    %90 = vmatpush1.xpose.msra.mxu0 0.0
    %91 = vmatprep.subr.mxu0 0.0
    %92 = vmatpush1.xpose.msra.mxu0 0.0
    %93 = vmatprep.subr.mxu0 0.0
    %94 = vmatpush1.xpose.msra.mxu0 %v67
    %95 = vmatprep.subr.mxu0 0.0
    %96 = vmatpush1.xpose.msra.mxu0 %v64
    %97 = vmatprep.subr.mxu0 0.0
    %98 = vmatpush1.xpose.msra.mxu0 %v61
    %99 = vmatprep.subr.mxu0 0.0
    %100 = vmatpush1.xpose.msra.mxu0 %v58
    %101 = vmatprep.subr.mxu0 0.0
    %102 = vmatpush2.xpose.msra.mxu0 0.0
    %103 = vmatprep.subr.mxu0 0.0
    %104 = vmatpush2.xpose.msra.mxu0 0.0
    %105 = vmatprep.subr.mxu0 0.0
    %106 = vmatpush2.xpose.msra.mxu0 0.0
    %107 = vmatprep.subr.mxu0 0.0
    %108 = vmatpush2.xpose.msra.mxu0 0.0
    %109 = vmatprep.subr.mxu0 0.0
    %110 = vmatpush2.xpose.msra.mxu0 0.0
    %111 = vmatprep.subr.mxu0 0.0
    %112 = vmatpush2.xpose.msra.mxu0 0.0
    %113 = vmatprep.subr.mxu0 0.0
    %114 = vmatpush2.xpose.msra.mxu0 0.0
    %115 = vmatprep.subr.mxu0 0.0
    %116 = vmatpush2.xpose.msra.mxu0 0.0
    %117 = vmatprep.subr.mxu0 0.0
    %118 = vmatpush2.xpose.msra.mxu0 0.0
    %119 = vmatprep.subr.mxu0 0.0
    %120 = vmatpush2.xpose.msra.mxu0 0.0
    %121 = vmatprep.subr.mxu0 0.0
    %122 = vmatpush2.xpose.msra.mxu0 0.0
    %123 = vmatprep.subr.mxu0 0.0
    %124 = vmatpush2.xpose.msra.mxu0 0.0
    %125 = vmatprep.subr.mxu0 0.0
    %126 = vmatpush2.xpose.msra.mxu0 0.0
    %127 = vmatprep.subr.mxu0 0.0
    %128 = vmatpush2.xpose.msra.mxu0 0.0
    %129 = vmatprep.subr.mxu0 0.0
    %130 = vmatpush2.xpose.msra.mxu0 0.0
    %131 = vmatprep.subr.mxu0 0.0
    %132 = vmatpush2.xpose.msra.mxu0 0.0
    %133 = vmatprep.mubr.f32.mxu0 0.0
    %134 = vmatmul.mubr.f32.gmra.mxu0 %v55
    %v135 = vpop.f32.mrf.mxu0
    %v136 = vadd.f32 %v51, %v135
    %v137 = vpop.f32.mrf.mxu0
    %138 = vdwg.mxu0
    %v139 = vmax.f32 %v136, 0.0
    %v140 = vsub.f32 0.0, %v139
    %v141 = vmul.f32 %v140, 1.442695
    %v142 = vpow.pop %v141
    %143 = vst.msk [vmem:[#allocation7] sm:$0xff] %vm53, %v142
    // Predicated region
    $region22: #{tpu_custom_call.1} parent=1 // pred_check
      _
    $region23: #{tpu_custom_call.1} parent=1 // pred_check_branch
      %145 = sbr.rel (0) target = $region25
    $region24: #{tpu_custom_call.1} parent=1 // pred_region
      %s147 = ssub.s32 128, 128
      %148 = vsyncadd [#allocation4], %s147
      %s150 = sshll.u32 [#allocation7], 4
      %s151 = int_to_ptr.vmem [resolvable:$true] %s150
      %153 = dma.vmem_to_hbm [thread:$0]  %s151, 128, %s3, [#allocation4]
    $region25: #{tpu_custom_call.1} parent=1 // pred_fallthru
      _
    // Predicated region
    $region26: #{tpu_custom_call.1} parent=1 // pred_check
      _
    $region27: #{tpu_custom_call.1} parent=1 // pred_check_branch
      %155 = sbr.rel (0) target = $region29
    $region28: #{tpu_custom_call.1} parent=1 // pred_region
      %156 = dma.done [#allocation4], 128
    $region29: #{tpu_custom_call.1} parent=1 // pred_fallthru
      _
    %157 = vsyncpa [#allocation3], 1
    %158 = vsyncpa [#allocation6], 1
    %159 = vsyncpa [#allocation4], 1

</llo_original>
